<compile_context>
chip_gen: v7x
topology: tpu7x:2x2x1
jax: 0.10.0
libtpu: 0.0.40
codegen_flags: <defaults>
</compile_context>

<pallas_src>
import math
from functools import partial

import numpy as np
import jax
import jax.numpy as jnp
from jax.experimental import pallas as pl
from jax.experimental.pallas import tpu as pltpu

LOGISTIC_K = 10.0  # self.logistic_k


def _log_odds_ratio(p):
    """Matches ModelNode.__log_odds_ratio__ (clamped log(p/(1-p)))."""
    if p < 1e-10:
        return -10.0
    if p > 1.0 - 1e-10:
        return 10.0
    return math.log(p / (1.0 - p))


def _round_up(x, m):
    return pl.cdiv(x, m) * m


def gate_logp_kernel(x_ref, klow_ref, khigh_ref, out_ref, *, logistic_k):
    # x_ref:    (D, TILE_N)  -- cells on lanes, features on sublanes
    # klow_ref: (D, 1)       -- k * low,  broadcast over lanes
    # khigh_ref:(D, 1)       -- k * high
    # out_ref:  (1, TILE_N)  -- lane-dense per-cell logp
    kx = logistic_k * x_ref[...]          # one vmul per element
    z_low = kx - klow_ref[...]            # k*(x - low)
    z_high = khigh_ref[...] - kx          # -k*(x - high)

    # Fused pair of numerically-stable logsigmoids: 2 exp + 1 log (EUP) instead
    # of 2 exp + 2 log1p.  Product of (1+exp(-|z|)) terms lies in [1, 4].
    prod = (1.0 + jnp.exp(-jnp.abs(z_low))) * (1.0 + jnp.exp(-jnp.abs(z_high)))
    per_dim = (jnp.minimum(z_low, 0.0) + jnp.minimum(z_high, 0.0)
               - jnp.log(prod))                                   # (D, TILE_N)

    out_ref[...] = jnp.sum(per_dim, axis=0, keepdims=True)        # (1, TILE_N)


def hyperrectangle_forward(x, low, high, *, logistic_k=LOGISTIC_K, tile_n=2048):
    """x: (N, D) f32; low/high: (D,) f32.  Returns (logp (N,), 0, 0, 0, 0)."""
    n, d = x.shape

    # Lane tile: multiple of 128, never larger than the padded cell count.
    tile_n = int(min(tile_n, _round_up(n, 128)))
    n_pad = int(_round_up(n, tile_n))
    grid = n_pad // tile_n

    # Transpose to (D, N) and pad the cell axis; padded columns are discarded.
    xt = jnp.pad(x.astype(jnp.float32).T, ((0, 0), (0, n_pad - n)))
    klow = (logistic_k * low.astype(jnp.float32)).reshape(d, 1)
    khigh = (logistic_k * high.astype(jnp.float32)).reshape(d, 1)

    # Advisory cost model: ~12 flops + 3 transcendentals per element.
    cost = pl.CostEstimate(
        flops=12 * n_pad * d,
        transcendentals=3 * n_pad * d,
        bytes_accessed=4 * n_pad * d + 4 * n_pad + 2 * 4 * d,
    )

    # Double-buffered x tile + out tile + params, with headroom; capped so it
    # stays safe on v7x (64 MiB physical VMEM).
    x_tile_bytes = d * tile_n * 4
    out_tile_bytes = tile_n * 4
    vmem_limit = int(min(32 << 20,
                         max(4 << 20, 4 * (2 * (x_tile_bytes + out_tile_bytes)))))

    logp_pad = pl.pallas_call(
        partial(gate_logp_kernel, logistic_k=float(logistic_k)),
        out_shape=jax.ShapeDtypeStruct((1, n_pad), jnp.float32),
        grid_spec=pltpu.PrefetchScalarGridSpec(
            num_scalar_prefetch=0,
            grid=(grid,),
            in_specs=[
                pl.BlockSpec((d, tile_n), lambda i: (0, i)),   # x (transposed)
                pl.BlockSpec((d, 1), lambda i: (0, 0)),        # k*low (replicated)
                pl.BlockSpec((d, 1), lambda i: (0, 0)),        # k*high (replicated)
            ],
            out_specs=pl.BlockSpec((1, tile_n), lambda i: (0, i)),
        ),
        compiler_params=pltpu.CompilerParams(
            dimension_semantics=("parallel",),
            vmem_limit_bytes=vmem_limit,
        ),
        cost_estimate=cost,
    )(xt, klow, khigh)

    logp = logp_pad[0, :n]   # (N,) -- matches the torch module's logp shape

    # The PyTorch module returns all regularization penalties as python 0.
    # TODO(synk): the NaN-gradient register_hook machinery has no forward-pass
    # equivalent and is omitted.
    return logp, 0, 0, 0, 0


def reference_forward(x, low, high, logistic_k=LOGISTIC_K):
    z_low = logistic_k * (x - low[None, :])
    z_high = -logistic_k * (x - high[None, :])
    per_dim = jax.nn.log_sigmoid(z_low) + jax.nn.log_sigmoid(z_high)
    return jnp.sum(per_dim, axis=1)


if __name__ == "__main__":
    # Deterministic "init_tree": list of (feature_name, low_prob, high_prob),
    # one entry per feature dimension (as HyperrectangleModelNode expects).
    n_cell, n_feat = 500, 8   # N deliberately NOT a multiple of the tile size
    init_tree = [(f"F{d}", 0.15 + 0.05 * d, 0.85 - 0.03 * d) for d in range(n_feat)]

    # Parameters: log-odds -> sigmoid (matches init_gate_params + forward).
    low_params = np.array([_log_odds_ratio(b[1]) for b in init_tree], np.float32)
    high_params = np.array([_log_odds_ratio(b[2]) for b in init_tree], np.float32)
    low = jax.nn.sigmoid(jnp.asarray(low_params))
    high = jax.nn.sigmoid(jnp.asarray(high_params))

    key = jax.random.PRNGKey(0)
    x = jax.random.uniform(key, (n_cell, n_feat), dtype=jnp.float32)

    # Small tile for the demo so the grid has >=2 steps (exercises tiling and
    # the padded tail); production would use the default tile_n=2048.
    logp, ref_pen, init_pen, size_pen, corner_pen = hyperrectangle_forward(
        x, low, high, tile_n=128)
    logp = jax.block_until_ready(logp)

    expected = reference_forward(x, low, high)
    np.testing.assert_allclose(np.asarray(logp), np.asarray(expected),
                               rtol=1e-5, atol=1e-5)
    print("KERNEL_OK")
</pallas_src>

<mosaic_0001>
module attributes {stable_mosaic.version = 11 : i64} {
  func.func @gate_logp_kernel(%arg0: i32, %arg1: memref<8x128xf32, #tpu.memory_space<vmem>>, %arg2: memref<8x1xf32, #tpu.memory_space<vmem>>, %arg3: memref<8x1xf32, #tpu.memory_space<vmem>>, %arg4: memref<1x128xf32, #tpu.memory_space<vmem>>) attributes {dimension_semantics = [#tpu.dimension_semantics<parallel>], iteration_bounds = array<i64: 4>, scalar_prefetch = 0 : i64, scratch_operands = 0 : i64, tpu.core_type = #tpu.core_type<tc>, window_params = [{transform_indices = @transform_0, window_bounds = array<i64: 8, 128>}, {pipeline_mode = #tpu.pipeline_mode<synchronous>, transform_indices = @transform_1, window_bounds = array<i64: 8, 1>}, {pipeline_mode = #tpu.pipeline_mode<synchronous>, transform_indices = @transform_2, window_bounds = array<i64: 8, 1>}, {transform_indices = @transform_3, window_bounds = array<i64: 1, 128>}]} {
    %c0 = arith.constant 0 : index
    %c0_0 = arith.constant 0 : index
    %0 = vector.load %arg1[%c0, %c0_0] : memref<8x128xf32, #tpu.memory_space<vmem>>, vector<8x128xf32>
    %cst = arith.constant 1.000000e+01 : f32
    %1 = vector.broadcast %cst : f32 to vector<8x128xf32>
    %2 = arith.mulf %1, %0 : vector<8x128xf32>
    %c0_1 = arith.constant 0 : index
    %c0_2 = arith.constant 0 : index
    %3 = vector.load %arg2[%c0_1, %c0_2] : memref<8x1xf32, #tpu.memory_space<vmem>>, vector<8x1xf32>
    %4 = vector.broadcast %3 : vector<8x1xf32> to vector<8x128xf32>
    %5 = arith.subf %2, %4 : vector<8x128xf32>
    %c0_3 = arith.constant 0 : index
    %c0_4 = arith.constant 0 : index
    %6 = vector.load %arg3[%c0_3, %c0_4] : memref<8x1xf32, #tpu.memory_space<vmem>>, vector<8x1xf32>
    %7 = vector.broadcast %6 : vector<8x1xf32> to vector<8x128xf32>
    %8 = arith.subf %7, %2 : vector<8x128xf32>
    %9 = math.absf %5 : vector<8x128xf32>
    %cst_5 = arith.constant 0.000000e+00 : f32
    %10 = vector.broadcast %cst_5 : f32 to vector<8x128xf32>
    %11 = arith.subf %10, %9 : vector<8x128xf32>
    %12 = math.exp %11 : vector<8x128xf32>
    %cst_6 = arith.constant 1.000000e+00 : f32
    %13 = vector.broadcast %cst_6 : f32 to vector<8x128xf32>
    %14 = arith.addf %13, %12 : vector<8x128xf32>
    %15 = math.absf %8 : vector<8x128xf32>
    %cst_7 = arith.constant 0.000000e+00 : f32
    %16 = vector.broadcast %cst_7 : f32 to vector<8x128xf32>
    %17 = arith.subf %16, %15 : vector<8x128xf32>
    %18 = math.exp %17 : vector<8x128xf32>
    %cst_8 = arith.constant 1.000000e+00 : f32
    %19 = vector.broadcast %cst_8 : f32 to vector<8x128xf32>
    %20 = arith.addf %19, %18 : vector<8x128xf32>
    %21 = arith.mulf %14, %20 : vector<8x128xf32>
    %cst_9 = arith.constant 0.000000e+00 : f32
    %22 = vector.broadcast %cst_9 : f32 to vector<8x128xf32>
    %23 = arith.minimumf %5, %22 : vector<8x128xf32>
    %cst_10 = arith.constant 0.000000e+00 : f32
    %24 = vector.broadcast %cst_10 : f32 to vector<8x128xf32>
    %25 = arith.minimumf %8, %24 : vector<8x128xf32>
    %26 = arith.addf %23, %25 : vector<8x128xf32>
    %27 = math.log %21 : vector<8x128xf32>
    %28 = arith.subf %26, %27 : vector<8x128xf32>
    %cst_11 = arith.constant dense<0.000000e+00> : vector<128xf32>
    %29 = vector.multi_reduction <add>, %28, %cst_11 [0] : vector<8x128xf32> to vector<128xf32>
    %30 = vector.shape_cast %29 : vector<128xf32> to vector<1x128xf32>
    %c0_12 = arith.constant 0 : index
    %c0_13 = arith.constant 0 : index
    %31 = vector.load %arg4[%c0_12, %c0_13] : memref<1x128xf32, #tpu.memory_space<vmem>>, vector<1x128xf32>
    tpu.vector_store %arg4[%c0_12, %c0_13], %30 {strides = array<i32>} : memref<1x128xf32, #tpu.memory_space<vmem>>, vector<1x128xf32>,
    return
  }
  func.func @transform_0(%arg0: i32) -> (i32, i32) {
    %c0_i32 = arith.constant 0 : i32
    %c0_i32_0 = arith.constant 0 : i32
    return %c0_i32, %arg0 : i32, i32
  }
  func.func @transform_1(%arg0: i32) -> (i32, i32) {
    %c0_i32 = arith.constant 0 : i32
    %c0_i32_0 = arith.constant 0 : i32
    %c0_i32_1 = arith.constant 0 : i32
    return %c0_i32, %c0_i32_0 : i32, i32
  }
  func.func @transform_2(%arg0: i32) -> (i32, i32) {
    %c0_i32 = arith.constant 0 : i32
    %c0_i32_0 = arith.constant 0 : i32
    %c0_i32_1 = arith.constant 0 : i32
    return %c0_i32, %c0_i32_0 : i32, i32
  }
  func.func @transform_3(%arg0: i32) -> (i32, i32) {
    %c0_i32 = arith.constant 0 : i32
    %c0_i32_0 = arith.constant 0 : i32
    return %c0_i32, %arg0 : i32, i32
  }
}

</mosaic_0001>

<llo_original>
// kernel: tpu_custom_call.1
$region0: #{tpu_custom_call.1}
  #allocation0 [shape = 'u32[]', space=smem, size = 0x4, offset = 0x4, fixed_abs, tag = 'smem constant byte address 0x4 - core index']
  #allocation1 [shape = 'u32[144,128]{1,0:T(1,128)}', space=vmem, size = 0x12000, scoped, tag = 'internal scratch']
  %s0 = inlined_call_operand.hbm [shape: f32[8,512], index: 0, kind: input, shape index: {}]
  %s1 = inlined_call_operand.vmem [shape: f32[8,1], index: 1, kind: input, shape index: {}]
  %s2 = inlined_call_operand.vmem [shape: f32[8,1], index: 2, kind: input, shape index: {}]
  %s3 = inlined_call_operand.hbm [shape: f32[1,512], index: 3, kind: output, shape index: {}]
  %s4 = sld [smem:[#allocation0]]
  $region49: #{tpu_custom_call.1} parent=0
    _
  %s6 = ssub.s32 1, %s4
  %s7 = scalar_select 0, %s6, %s4
  $region1: #{tpu_custom_call.1} parent=0
    #allocation2 [shape = 'u8[8192]{0}', space=vmem, size = 0x2000, scoped, tag = 'input window, operand 0']
    #allocation3 [shape = 's32[2]{0}', space=sflag, size = 0x8, scoped, tag = 'scoped memory for tpu_custom_call.1']
    #allocation4 [shape = 's32[2]{0}', space=sflag, size = 0x8, scoped, tag = 'scoped memory for tpu_custom_call.1']
    #allocation5 [shape = 'u8[1024]{0}', space=vmem, size = 0x400, scoped, tag = 'output window, operand 0']
    %8 = vsyncpa [#allocation3], 0
    %s9 = scalar_lea.sflag [#allocation3], 1
    %10 = vsyncpa %s9, 0
    %11 = vsyncpa [#allocation4], 0
    %s12 = scalar_lea.sflag [#allocation4], 1
    %13 = vsyncpa %s12, 0
    loop: start=0, step=1, limit=6
    $region2: #{tpu_custom_call.1} parent=1 // loop_pre_header
      _
    $region3: #{tpu_custom_call.1} parent=1 // loop_header
      %s15 = sphi 0, %s19
      %p16 = scmp.ge.s32.totalorder %s15, 6
      %s25 = sphi 0, %s27
      %s28 = sphi 0, %s25
      %s29 = sphi 0, %s28
      %s45 = sphi 0, %s29
      %s49 = sphi 0, %s49
      %s51 = sphi 0, %s49
      %s52 = sphi 0, %s51
      %s66 = sphi 0, %s52
      %s70 = sphi 0, %s70
      %s72 = sphi 0, %s70
      %s73 = sphi 0, %s72
      %s87 = sphi 0, %s73
      %s93 = sphi 0, %s95
      %s96 = sphi 0, %s93
      %s97 = sphi 0, %s96
      %s113 = sphi 0, %s97
    $region4: #{tpu_custom_call.1} parent=1 // loop_header_branch
      %18 = sbr.rel (%p16) target = $region8
    $region5: #{tpu_custom_call.1} parent=1 // loop_body
      %s20 = ssub.s32 %s15, 1
      %s21 = ssub.s32 %s15, 2
      %s22 = sadd.s32 %s15, 1
      %s23 = ssub.s32 %s15, %s22
      %p24 = scmp.eq.s32.totalorder %s23, 0
      %s26 = sadd.s32 %s25, 1
      %s27 = scalar_select %p24, %s25, %s26
      %p30 = pneg %p24
      %p31 = scmp.eq.s32.totalorder %s15, 3
      %p32 = por %p30, %p31
      %p33 = scmp.ne.s32.totalorder %s25, %s28
      %p34 = scmp.eq.s32.totalorder %s15, 0
      %p35 = por %p33, %p34
      %p36 = scmp.ne.s32.totalorder %s25, %s28
      %p37 = scmp.eq.s32.totalorder %s20, 3
      %p38 = por %p36, %p37
      %p39 = scmp.ne.s32.totalorder %s28, %s29
      %p40 = scmp.eq.s32.totalorder %s20, 0
      %p41 = por %p39, %p40
      %p42 = scmp.ne.s32.totalorder %s28, %s29
      %p43 = scmp.eq.s32.totalorder %s21, 3
      %p44 = por %p42, %p43
      %p46 = scmp.ne.s32.totalorder %s29, %s45
      %p47 = scmp.eq.s32.totalorder %s21, 0
      %p48 = por %p46, %p47
      %s50 = sadd.s32 %s49, 1
      %p53 = scmp.eq.s32.totalorder %s15, 3
      %p54 = scmp.ne.s32.totalorder %s49, %s51
      %p55 = scmp.eq.s32.totalorder %s15, 0
      %p56 = por %p54, %p55
      %p57 = scmp.ne.s32.totalorder %s49, %s51
      %p58 = scmp.eq.s32.totalorder %s20, 3
      %p59 = por %p57, %p58
      %p60 = scmp.ne.s32.totalorder %s51, %s52
      %p61 = scmp.eq.s32.totalorder %s20, 0
      %p62 = por %p60, %p61
      %p63 = scmp.ne.s32.totalorder %s51, %s52
      %p64 = scmp.eq.s32.totalorder %s21, 3
      %p65 = por %p63, %p64
      %p67 = scmp.ne.s32.totalorder %s52, %s66
      %p68 = scmp.eq.s32.totalorder %s21, 0
      %p69 = por %p67, %p68
      %s71 = sadd.s32 %s70, 1
      %p74 = scmp.eq.s32.totalorder %s15, 3
      %p75 = scmp.ne.s32.totalorder %s70, %s72
      %p76 = scmp.eq.s32.totalorder %s15, 0
      %p77 = por %p75, %p76
      %p78 = scmp.ne.s32.totalorder %s70, %s72
      %p79 = scmp.eq.s32.totalorder %s20, 3
      %p80 = por %p78, %p79
      %p81 = scmp.ne.s32.totalorder %s72, %s73
      %p82 = scmp.eq.s32.totalorder %s20, 0
      %p83 = por %p81, %p82
      %p84 = scmp.ne.s32.totalorder %s72, %s73
      %p85 = scmp.eq.s32.totalorder %s21, 3
      %p86 = por %p84, %p85
      %p88 = scmp.ne.s32.totalorder %s73, %s87
      %p89 = scmp.eq.s32.totalorder %s21, 0
      %p90 = por %p88, %p89
      %s91 = ssub.s32 %s15, %s22
      %p92 = scmp.eq.s32.totalorder %s91, 0
      %s94 = sadd.s32 %s93, 1
      %s95 = scalar_select %p92, %s93, %s94
      %p98 = pneg %p92
      %p99 = scmp.eq.s32.totalorder %s15, 3
      %p100 = por %p98, %p99
      %p101 = scmp.ne.s32.totalorder %s93, %s96
      %p102 = scmp.eq.s32.totalorder %s15, 0
      %p103 = por %p101, %p102
      %p104 = scmp.ne.s32.totalorder %s93, %s96
      %p105 = scmp.eq.s32.totalorder %s20, 3
      %p106 = por %p104, %p105
      %p107 = scmp.ne.s32.totalorder %s96, %s97
      %p108 = scmp.eq.s32.totalorder %s20, 0
      %p109 = por %p107, %p108
      %p110 = scmp.ne.s32.totalorder %s96, %s97
      %p111 = scmp.eq.s32.totalorder %s21, 3
      %p112 = por %p110, %p111
      %p114 = scmp.ne.s32.totalorder %s97, %s113
      %p115 = scmp.eq.s32.totalorder %s21, 0
      %p116 = por %p114, %p115
      %p117 = scmp.le.s32.totalorder 1, %s15
      %p118 = scmp.lt.s32.totalorder %s15, 5
      %p119 = pnand %p117, %p118
      %p120 = pneg %p119
      // Predicated region
      $region9: #{tpu_custom_call.1} parent=5 // pred_check
        _
      $region10: #{tpu_custom_call.1} parent=5 // pred_check_branch
        %122 = sbr.rel (%p119) target = $region12
      $region11: #{tpu_custom_call.1} parent=5 // pred_region
        %s123 = ssub.s32 %s15, 1
        // Predicated region
        $region13: #{tpu_custom_call.1} parent=11 // pred_check
          %p124 = pneg %p62
        $region14: #{tpu_custom_call.1} parent=11 // pred_check_branch
          %126 = sbr.rel (%p124) target = $region16
        $region15: #{tpu_custom_call.1} parent=11 // pred_region
          _
        $region16: #{tpu_custom_call.1} parent=11 // pred_fallthru
          _
        // Predicated region
        $region17: #{tpu_custom_call.1} parent=11 // pred_check
          %p127 = pneg %p83
        $region18: #{tpu_custom_call.1} parent=11 // pred_check_branch
          %129 = sbr.rel (%p127) target = $region20
        $region19: #{tpu_custom_call.1} parent=11 // pred_region
          _
        $region20: #{tpu_custom_call.1} parent=11 // pred_fallthru
          _
      $region12: #{tpu_custom_call.1} parent=5 // pred_fallthru
        _
      %p130 = scmp.lt.s32.totalorder %s15, 4
      // Predicated region
      $region21: #{tpu_custom_call.1} parent=5 // pred_check
        %p131 = pneg %p130
      $region22: #{tpu_custom_call.1} parent=5 // pred_check_branch
        %133 = sbr.rel (%p131) target = $region24
      $region23: #{tpu_custom_call.1} parent=5 // pred_region
        // Predicated region
        $region25: #{tpu_custom_call.1} parent=23 // pred_check
          %p134 = pneg %p35
        $region26: #{tpu_custom_call.1} parent=23 // pred_check_branch
          %136 = sbr.rel (%p134) target = $region28
        $region27: #{tpu_custom_call.1} parent=23 // pred_region
          %s137 = sand.u32 %s25, 1
          %s138 = scalar_lea.sflag [#allocation3], %s137
          %s139 = sand.u32 %s25, 1
          %s140 = smul.addr %s139, 8
          %s141 = scalar_lea.vmem [#allocation2], %s140
          %s143 = ssub.s32 128, 128
          %144 = vsyncadd %s138, %s143
          %s145 = smul.addr %s15, 128
          %s146 = scalar_lea.hbm %s0, %s145
          %s148 = sshll.u32 %s141, 4
          %s149 = int_to_ptr.vmem [resolvable:$true] %s148
          %151 = dma.hbm_to_vmem [thread:$0]  %s146, 128, %s149, %s138
        $region28: #{tpu_custom_call.1} parent=23 // pred_fallthru
          _
      $region24: #{tpu_custom_call.1} parent=5 // pred_fallthru
        _
      %p152 = scmp.le.s32.totalorder 1, %s15
      %p153 = scmp.lt.s32.totalorder %s15, 5
      %p154 = pnand %p152, %p153
      %p155 = pneg %p154
      // Predicated region
      $region29: #{tpu_custom_call.1} parent=5 // pred_check
        _
      $region30: #{tpu_custom_call.1} parent=5 // pred_check_branch
        %157 = sbr.rel (%p154) target = $region32
      $region31: #{tpu_custom_call.1} parent=5 // pred_region
        %s158 = ssub.s32 %s15, 1
        %s159 = sand.u32 %s28, 1
        %s160 = scalar_lea.sflag [#allocation3], %s159
        %s161 = sand.u32 %s28, 1
        %s162 = smul.addr %s161, 8
        %s163 = scalar_lea.vmem [#allocation2], %s162
        // Predicated region
        $region33: #{tpu_custom_call.1} parent=31 // pred_check
          %p164 = pneg %p41
        $region34: #{tpu_custom_call.1} parent=31 // pred_check_branch
          %166 = sbr.rel (%p164) target = $region36
        $region35: #{tpu_custom_call.1} parent=31 // pred_region
          %167 = dma.done %s160, 128
        $region36: #{tpu_custom_call.1} parent=31 // pred_fallthru
          _
        %s168 = sand.u32 %s28, 1
        %s169 = scalar_lea.sflag [#allocation3], %s168
        %s170 = sand.u32 %s28, 1
        %s171 = smul.addr %s170, 8
        %s172 = scalar_lea.vmem [#allocation2], %s171
        %p173 = pneg %p41
        %p174 = pneg %p38
        %p175 = pneg %p62
        %p176 = pneg %p59
        %p177 = pneg %p83
        %p178 = pneg %p80
        %p179 = pneg %p109
        %p180 = pneg %p106
        %s181 = sand.u32 %s96, 1
        %s182 = scalar_lea.sflag [#allocation4], %s181
        %s183 = sand.u32 %s96, 1
        %s184 = scalar_lea.vmem [#allocation5], %s183
        %v185 = vld [vmem:[%s163] sm:$0xff]
        %v186 = vmul.f32 %v185, 10.0
        %v187 = vld [vmem:[%s1] sm:$0xff]
        %189 = vset.pattern.permute.xlu0 0
        %190 = vperm.xlu0 %189, %v187
        %v191 = vpop.permute.xlu0 %190
        %v193 = vsub.f32 %v186, %v191
        %v194 = vld [vmem:[%s2] sm:$0xff]
        %196 = vset.pattern.permute.xlu0 0
        %197 = vperm.xlu0 %196, %v194
        %v198 = vpop.permute.xlu0 %197
        %v200 = vsub.f32 %v198, %v186
        %v201 = vand.u32 2147483647, %v193
        %v202 = vsub.f32 0.0, %v201
        %v203 = vmul.f32 %v202, 1.442695
        %v204 = vpow.pop %v203
        %v205 = vadd.f32 %v204, 1.0
        %v206 = vand.u32 2147483647, %v200
        %v207 = vsub.f32 0.0, %v206
        %v208 = vmul.f32 %v207, 1.442695
        %v209 = vpow.pop %v208
        %v210 = vadd.f32 %v209, 1.0
        %v211 = vmul.f32 %v205, %v210
        %v212 = vmin.f32 %v193, 0.0
        %v213 = vmin.f32 %v200, 0.0
        %v214 = vadd.f32 %v212, %v213
        %v215 = vlog2.pop %v211
        %v216 = vmul.f32 %v215, 0.6931472
        %v217 = vsub.f32 %v214, %v216
        %v218 = vrot.slane %v217, 4
        %v219 = vadd.f32 %v217, %v218
        %v220 = vrot.slane %v219, 2
        %v221 = vadd.f32 %v219, %v220
        %v222 = vrot.slane %v221, 1
        %v223 = vadd.f32 %v221, %v222
        %224 = vst [vmem:[%s184] sm:$0x1] %v223
        %s225 = sand.u32 %s96, 1
        %s226 = scalar_lea.sflag [#allocation4], %s225
        %s227 = sand.u32 %s96, 1
        %s228 = scalar_lea.vmem [#allocation5], %s227
        // Predicated region
        $region37: #{tpu_custom_call.1} parent=31 // pred_check
          %p229 = pneg %p106
        $region38: #{tpu_custom_call.1} parent=31 // pred_check_branch
          %231 = sbr.rel (%p229) target = $region40
        $region39: #{tpu_custom_call.1} parent=31 // pred_region
          %s233 = ssub.s32 16, 16
          %234 = vsyncadd %s226, %s233
          %s235 = smul.addr %s20, 16
          %s236 = scalar_lea.hbm %s3, %s235
          %s238 = sshll.u32 %s228, 4
          %s239 = int_to_ptr.vmem [resolvable:$true] %s238
          %241 = dma.vmem_to_hbm [thread:$0]  %s239, 16, %s236, %s226
        $region40: #{tpu_custom_call.1} parent=31 // pred_fallthru
          _
      $region32: #{tpu_custom_call.1} parent=5 // pred_fallthru
        _
      %p242 = scmp.le.s32.totalorder 2, %s15
      // Predicated region
      $region41: #{tpu_custom_call.1} parent=5 // pred_check
        %p243 = pneg %p242
      $region42: #{tpu_custom_call.1} parent=5 // pred_check_branch
        %245 = sbr.rel (%p243) target = $region44
      $region43: #{tpu_custom_call.1} parent=5 // pred_region
        %s246 = ssub.s32 %s15, 2
        // Predicated region
        $region45: #{tpu_custom_call.1} parent=43 // pred_check
          %p247 = pneg %p112
        $region46: #{tpu_custom_call.1} parent=43 // pred_check_branch
          %249 = sbr.rel (%p247) target = $region48
        $region47: #{tpu_custom_call.1} parent=43 // pred_region
          %s250 = sand.u32 %s97, 1
          %s251 = scalar_lea.sflag [#allocation4], %s250
          %s252 = sand.u32 %s97, 1
          %s253 = scalar_lea.vmem [#allocation5], %s252
          %254 = dma.done %s251, 16
        $region48: #{tpu_custom_call.1} parent=43 // pred_fallthru
          _
      $region44: #{tpu_custom_call.1} parent=5 // pred_fallthru
        _
    $region6: #{tpu_custom_call.1} parent=1 // loop_footer
      %s19 = sadd.s32 1, %s15
    $region7: #{tpu_custom_call.1} parent=1 // loop_footer_branch
      %14 = sbr.rel target = $region3
    $region8: #{tpu_custom_call.1} parent=1 // loop_exit
      _
    %255 = vsyncpa [#allocation3], 1
    %s256 = scalar_lea.sflag [#allocation3], 1
    %257 = vsyncpa %s256, 1
    %258 = vsyncpa [#allocation4], 1
    %s259 = scalar_lea.sflag [#allocation4], 1
    %260 = vsyncpa %s259, 1

</llo_original>
